<compile_context>
chip_gen: v7x
topology: tpu7x:2x2x1
jax: 0.10.0
libtpu: 0.0.40
codegen_flags: <defaults>
</compile_context>

<pallas_src>
import functools

import jax
import jax.numpy as jnp
from jax.experimental import pallas as pl
from jax.experimental.pallas import tpu as pltpu

LN_EPS = 1e-5


def _round_up(a, b):
    return -(-a // b) * b


def _vmem_limit_bytes():
    """~75% of physical VMEM (per core), re-queried every trace (no caching)."""
    cap = None
    try:
        cap = pltpu.get_tpu_info().vmem_capacity_bytes
    except Exception:
        cap = None
    if not cap:
        try:
            kind = jax.devices()[0].device_kind.lower()
            cap = 64 * 1024 * 1024 if "v7" in kind else 128 * 1024 * 1024
        except Exception:
            cap = 64 * 1024 * 1024  # conservative: fits every generation
    return min(int(cap * 3 // 4), 100 * 1024 * 1024)


def _elementwise_bf16():
    """bf16 bias+ReLU only on generations with a bf16 VALU (v6e / v7x)."""
    try:
        kind = jax.devices()[0].device_kind.lower()
    except Exception:
        return False
    return ("v6" in kind) or ("v7" in kind)


def _largest_divisor_leq(n, cap, multiple):
    best = 0
    d = multiple
    top = min(cap, n)
    while d <= top:
        if n % d == 0:
            best = d
        d += multiple
    return best


def _pick_tk(h4, tk):
    """Largest divisor of 4H that is <= tk, preferring multiples of 128."""
    if h4 <= tk:
        return h4
    for mult in (128, 8, 1):
        c = _largest_divisor_leq(h4, tk, mult)
        if c:
            return c
    return h4


def _working_set_bytes(tm, tk, H, H4, resident, acc_in_out, x_bytes):
    """Conservative per-step VMEM estimate (assumes double buffering everywhere)."""
    b = 2 * tm * H * x_bytes            # x row tile (double-buffered)
    b += 2 * tm * H * x_bytes           # output row tile (double-buffered)
    b += tm * H * 2                     # bf16 LayerNorm cache scratch
    if not acc_in_out:
        b += tm * H * 4                 # f32 accumulator scratch
    b += 3 * 2 * H * 4                  # gamma / beta / b2
    if resident:
        b += 2 * (2 * H * H4 * 2 + H4 * 4)   # full bf16 W1+W2 (+ f32 b1)
    else:
        b += 2 * (2 * H * tk * 2 + tk * 4)   # streamed W1/W2 chunk (+ b1 chunk)
    return b


def _fc_layer_kernel(x_ref, gamma_ref, beta_ref, w1_ref, b1_ref, w2_ref, b2_ref,
                     o_ref, *scratch, resident, acc_in_out, elem_bf16):
    if acc_in_out:
        (xn_ref,) = scratch
        acc_ref = o_ref                    # accumulate straight into the f32 output block
    else:
        acc_ref, xn_ref = scratch

    k = pl.program_id(1)
    nk = pl.num_programs(1)

    # --- once per row tile: LayerNorm (f32) -> bf16 cache; seed / zero the accumulator ---
    @pl.when(k == 0)
    def _init():
        x = x_ref[...].astype(jnp.float32)
        mean = jnp.mean(x, axis=-1, keepdims=True)
        xc = x - mean
        var = jnp.mean(xc * xc, axis=-1, keepdims=True)
        xn = xc * jax.lax.rsqrt(var + LN_EPS)
        xn = xn * gamma_ref[...] + beta_ref[...]
        xn_ref[...] = xn.astype(xn_ref.dtype)          # bf16 for the MXU
        if acc_in_out:
            acc_ref[...] = x + b2_ref[...]             # residual + output bias up front
        else:
            acc_ref[...] = jnp.zeros_like(acc_ref)

    # --- per 4H chunk: relu(xn @ W1[:,chunk] + b1[chunk]) @ W2[chunk,:]  (f32 accumulate) ---
    if resident:
        w1 = w1_ref[k]          # (H, tk)   weights stay in VMEM for the whole grid
        b1v = b1_ref[k]         # (1, tk)
        w2 = w2_ref[k]          # (tk, H)
    else:
        w1 = w1_ref[...]
        b1v = b1_ref[...]
        w2 = w2_ref[...]

    h = jnp.dot(xn_ref[...], w1, preferred_element_type=jnp.float32)
    if elem_bf16:
        # v6e / v7x: bf16 VALU -> half the vreg / load-store traffic of this stage
        h = jnp.maximum(h.astype(jnp.bfloat16) + b1v.astype(jnp.bfloat16), 0.0)
    else:
        h = jnp.maximum(h + b1v, 0.0).astype(w2.dtype)
    acc_ref[...] += jnp.dot(h, w2, preferred_element_type=jnp.float32)

    # --- last chunk (only needed when a separate f32 scratch accumulator is used) ---
    if not acc_in_out:
        @pl.when(k == nk - 1)
        def _finalize():
            out = acc_ref[...] + b2_ref[...] + x_ref[...].astype(jnp.float32)
            o_ref[...] = out.astype(o_ref.dtype)


@functools.partial(jax.jit, static_argnames=("tm", "tk"))
def fc_net_layer(x, gamma, beta, w1_t, b1, w2_t, b2, *, tm=512, tk=1024):
    """x: [B, S, H].  Weights pre-transposed: w1_t [H, 4H], w2_t [4H, H].

    tm: row tile.  Keep tm >= 256 even on v5e unless N is tiny (weight-streaming
    intensity ~tm FLOP/byte must stay above the HBM/MXU crossover).
    tk: chunk of the expanded 4H dimension.
    """
    B, S, H = x.shape
    H4 = w1_t.shape[1]
    N = B * S
    x_bytes = x.dtype.itemsize

    acc_in_out = x.dtype == jnp.float32
    elem_bf16 = _elementwise_bf16()
    vmem_limit = _vmem_limit_bytes()
    budget = int(vmem_limit * 0.9)

    # ---- tile selection ----
    tk_eff = _pick_tk(H4, tk)
    n_pad8 = _round_up(N, 8)
    tm_eff = min(_round_up(tm, 8), n_pad8)
    if n_pad8 // tm_eff < 2 and n_pad8 >= 2 * 512:
        # give the "parallel" row axis >= 2 blocks (v7x megacore) without dropping below ~512
        tm_eff = _round_up(-(-n_pad8 // 2), 8)

    # Hold the full bf16 weights resident in VMEM if the budget allows; otherwise stream
    # chunks and shrink tk (then tm) until the per-step working set fits.
    resident = _working_set_bytes(tm_eff, tk_eff, H, H4, True, acc_in_out, x_bytes) <= budget
    if not resident:
        while (_working_set_bytes(tm_eff, tk_eff, H, H4, False, acc_in_out, x_bytes) > budget
               and tk_eff % 256 == 0 and tk_eff > 256):
            tk_eff //= 2
        while (_working_set_bytes(tm_eff, tk_eff, H, H4, False, acc_in_out, x_bytes) > budget
               and tm_eff > 256):
            tm_eff = max(256, _round_up(tm_eff // 2, 8))

    n_pad = _round_up(N, tm_eff)
    nk = H4 // tk_eff
    n_row_blocks = n_pad // tm_eff
    grid = (n_row_blocks, nk)

    # ---- operand prep: bf16 weights in chunk-major (nk, ., .) layout ----
    x2d = x.reshape(N, H)
    if n_pad != N:
        x2d = jnp.pad(x2d, ((0, n_pad - N), (0, 0)))
    gamma2d = gamma.reshape(1, H).astype(jnp.float32)
    beta2d = beta.reshape(1, H).astype(jnp.float32)
    b2_2d = b2.reshape(1, H).astype(jnp.float32)
    w1_c = w1_t.astype(jnp.bfloat16).reshape(H, nk, tk_eff).transpose(1, 0, 2)  # (nk, H, tk)
    w2_c = w2_t.astype(jnp.bfloat16).reshape(nk, tk_eff, H)                     # (nk, tk, H)
    b1_c = b1.astype(jnp.float32).reshape(nk, 1, tk_eff)                        # (nk, 1, tk)

    if resident:
        # constant index map -> weights DMA'd from HBM exactly once, reused for all row tiles
        w1_spec = pl.BlockSpec((nk, H, tk_eff), lambda i, k: (0, 0, 0))
        b1_spec = pl.BlockSpec((nk, 1, tk_eff), lambda i, k: (0, 0, 0))
        w2_spec = pl.BlockSpec((nk, tk_eff, H), lambda i, k: (0, 0, 0))
    else:
        w1_spec = pl.BlockSpec((None, H, tk_eff), lambda i, k: (k, 0, 0))
        b1_spec = pl.BlockSpec((None, 1, tk_eff), lambda i, k: (k, 0, 0))
        w2_spec = pl.BlockSpec((None, tk_eff, H), lambda i, k: (k, 0, 0))

    scratch = [pltpu.VMEM((tm_eff, H), jnp.bfloat16)]          # cached LayerNorm output
    if not acc_in_out:
        scratch = [pltpu.VMEM((tm_eff, H), jnp.float32)] + scratch

    weight_bytes = 2 * H * H4 * 2 + H4 * 4
    if not resident:
        weight_bytes *= n_row_blocks
    cost = pl.CostEstimate(
        flops=4 * N * H * H4,
        transcendentals=N,
        bytes_accessed=weight_bytes + 2 * N * H * x_bytes + 3 * H * 4,
    )

    kernel = functools.partial(_fc_layer_kernel, resident=resident,
                               acc_in_out=acc_in_out, elem_bf16=elem_bf16)

    out = pl.pallas_call(
        kernel,
        out_shape=jax.ShapeDtypeStruct((n_pad, H), x.dtype),
        grid_spec=pltpu.PrefetchScalarGridSpec(
            num_scalar_prefetch=0,
            grid=grid,
            in_specs=[
                pl.BlockSpec((tm_eff, H), lambda i, k: (i, 0)),   # x row tile
                pl.BlockSpec((1, H), lambda i, k: (0, 0)),        # gamma
                pl.BlockSpec((1, H), lambda i, k: (0, 0)),        # beta
                w1_spec,                                           # W1^T (bf16)
                b1_spec,                                           # b1
                w2_spec,                                           # W2^T (bf16)
                pl.BlockSpec((1, H), lambda i, k: (0, 0)),        # b2
            ],
            out_specs=pl.BlockSpec((tm_eff, H), lambda i, k: (i, 0)),
            scratch_shapes=scratch,
        ),
        compiler_params=pltpu.CompilerParams(
            dimension_semantics=("parallel", "arbitrary"),
            vmem_limit_bytes=vmem_limit,
        ),
        cost_estimate=cost,
    )(x2d, gamma2d, beta2d, w1_c, b1_c, w2_c, b2_2d)

    return out[:N].reshape(B, S, H)


def reference(x, gamma, beta, w1_t, b1, w2_t, b2):
    xf = x.astype(jnp.float32)
    mean = jnp.mean(xf, axis=-1, keepdims=True)
    var = jnp.mean((xf - mean) ** 2, axis=-1, keepdims=True)
    h = (xf - mean) / jnp.sqrt(var + LN_EPS) * gamma + beta
    h = jnp.maximum(h @ w1_t + b1, 0.0)
    h = h @ w2_t + b2
    return h + xf


if __name__ == "__main__":
    # Small, module-consistent shapes: batch=2, seq=8, hidden=32.
    B, S, H = 2, 8, 32
    H4 = 4 * H

    key = jax.random.PRNGKey(0)
    kx, kw1, kb1, kw2, kb2 = jax.random.split(key, 5)

    x = jax.random.normal(kx, (B, S, H), dtype=jnp.float32)

    # Deterministic parameter init (mimicking PyTorch defaults in spirit).
    gamma = jnp.ones((H,), jnp.float32)
    beta = jnp.zeros((H,), jnp.float32)
    bound1 = 1.0 / (H ** 0.5)
    bound2 = 1.0 / (H4 ** 0.5)
    # PyTorch Linear weight is (out, in); we store the transposed (in, out) layout.
    w1_t = jax.random.uniform(kw1, (H, H4), jnp.float32, -bound1, bound1)
    b1 = jax.random.uniform(kb1, (H4,), jnp.float32, -bound1, bound1)
    w2_t = jax.random.uniform(kw2, (H4, H), jnp.float32, -bound2, bound2)
    b2 = jax.random.uniform(kb2, (H,), jnp.float32, -bound2, bound2)

    out = fc_net_layer(x, gamma, beta, w1_t, b1, w2_t, b2)
    out = jax.block_until_ready(out)

    ref = reference(x, gamma, beta, w1_t, b1, w2_t, b2)
    assert out.shape == (B, S, H)
    # bf16 matmul operands (f32 accumulation) => relaxed tolerance vs. the f32 reference.
    assert jnp.allclose(out, ref, atol=5e-2, rtol=5e-2), "mismatch vs reference"

    print("KERNEL_OK")
</pallas_src>

<mosaic_0001>
module attributes {stable_mosaic.version = 11 : i64} {
  func.func @_fc_layer_kernel(%arg0: i32, %arg1: i32, %arg2: memref<16x32xf32, #tpu.memory_space<vmem>>, %arg3: memref<1x32xf32, #tpu.memory_space<vmem>>, %arg4: memref<1x32xf32, #tpu.memory_space<vmem>>, %arg5: memref<1x32x128xbf16, #tpu.memory_space<vmem>>, %arg6: memref<1x1x128xf32, #tpu.memory_space<vmem>>, %arg7: memref<1x128x32xbf16, #tpu.memory_space<vmem>>, %arg8: memref<1x32xf32, #tpu.memory_space<vmem>>, %arg9: memref<16x32xf32, #tpu.memory_space<vmem>>, %arg10: memref<16x32xbf16, #tpu.memory_space<vmem>>) attributes {dimension_semantics = [#tpu.dimension_semantics<parallel>, #tpu.dimension_semantics<arbitrary>], iteration_bounds = array<i64: 1, 1>, scalar_prefetch = 0 : i64, scratch_operands = 1 : i64, tpu.core_type = #tpu.core_type<tc>, window_params = [{transform_indices = @transform_0, window_bounds = array<i64: 16, 32>}, {pipeline_mode = #tpu.pipeline_mode<synchronous>, transform_indices = @transform_1, window_bounds = array<i64: 1, 32>}, {pipeline_mode = #tpu.pipeline_mode<synchronous>, transform_indices = @transform_2, window_bounds = array<i64: 1, 32>}, {pipeline_mode = #tpu.pipeline_mode<synchronous>, transform_indices = @transform_3, window_bounds = array<i64: 1, 32, 128>}, {pipeline_mode = #tpu.pipeline_mode<synchronous>, transform_indices = @transform_4, window_bounds = array<i64: 1, 1, 128>}, {pipeline_mode = #tpu.pipeline_mode<synchronous>, transform_indices = @transform_5, window_bounds = array<i64: 1, 128, 32>}, {pipeline_mode = #tpu.pipeline_mode<synchronous>, transform_indices = @transform_6, window_bounds = array<i64: 1, 32>}, {transform_indices = @transform_7, window_bounds = array<i64: 16, 32>}]} {
    %c0_i32 = arith.constant 0 : i32
    %0 = arith.cmpi eq, %arg1, %c0_i32 : i32
    %1 = arith.extui %0 : i1 to i32
    %c0_i32_0 = arith.constant 0 : i32
    %2 = arith.cmpi ne, %1, %c0_i32_0 : i32
    scf.if %2 {
      %c0_14 = arith.constant 0 : index
      %c0_15 = arith.constant 0 : index
      %23 = vector.load %arg2[%c0_14, %c0_15] : memref<16x32xf32, #tpu.memory_space<vmem>>, vector<16x32xf32>
      %cst_16 = arith.constant dense<0.000000e+00> : vector<16xf32>
      %24 = vector.multi_reduction <add>, %23, %cst_16 [1] : vector<16x32xf32> to vector<16xf32>
      %25 = vector.shape_cast %24 : vector<16xf32> to vector<16x1xf32>
      %cst_17 = arith.constant 3.200000e+01 : f32
      %26 = vector.broadcast %cst_17 : f32 to vector<16x1xf32>
      %27 = arith.divf %25, %26 : vector<16x1xf32>
      %28 = vector.broadcast %27 : vector<16x1xf32> to vector<16x32xf32>
      %29 = arith.subf %23, %28 : vector<16x32xf32>
      %30 = arith.mulf %29, %29 : vector<16x32xf32>
      %cst_18 = arith.constant dense<0.000000e+00> : vector<16xf32>
      %31 = vector.multi_reduction <add>, %30, %cst_18 [1] : vector<16x32xf32> to vector<16xf32>
      %32 = vector.shape_cast %31 : vector<16xf32> to vector<16x1xf32>
      %cst_19 = arith.constant 3.200000e+01 : f32
      %33 = vector.broadcast %cst_19 : f32 to vector<16x1xf32>
      %34 = arith.divf %32, %33 : vector<16x1xf32>
      %cst_20 = arith.constant 9.99999974E-6 : f32
      %35 = vector.broadcast %cst_20 : f32 to vector<16x1xf32>
      %36 = arith.addf %34, %35 : vector<16x1xf32>
      %37 = math.rsqrt %36 : vector<16x1xf32>
      %38 = vector.broadcast %37 : vector<16x1xf32> to vector<16x32xf32>
      %39 = arith.mulf %29, %38 : vector<16x32xf32>
      %c0_21 = arith.constant 0 : index
      %c0_22 = arith.constant 0 : index
      %40 = vector.load %arg3[%c0_21, %c0_22] : memref<1x32xf32, #tpu.memory_space<vmem>>, vector<1x32xf32>
      %41 = vector.broadcast %40 : vector<1x32xf32> to vector<16x32xf32>
      %42 = arith.mulf %39, %41 : vector<16x32xf32>
      %c0_23 = arith.constant 0 : index
      %c0_24 = arith.constant 0 : index
      %43 = vector.load %arg4[%c0_23, %c0_24] : memref<1x32xf32, #tpu.memory_space<vmem>>, vector<1x32xf32>
      %44 = vector.broadcast %43 : vector<1x32xf32> to vector<16x32xf32>
      %45 = arith.addf %42, %44 : vector<16x32xf32>
      %46 = arith.truncf %45 : vector<16x32xf32> to vector<16x32xbf16>
      %c0_25 = arith.constant 0 : index
      %c0_26 = arith.constant 0 : index
      %47 = vector.load %arg10[%c0_25, %c0_26] : memref<16x32xbf16, #tpu.memory_space<vmem>>, vector<16x32xbf16>
      tpu.vector_store %arg10[%c0_25, %c0_26], %46 {strides = array<i32>} : memref<16x32xbf16, #tpu.memory_space<vmem>>, vector<16x32xbf16>,
      %c0_27 = arith.constant 0 : index
      %c0_28 = arith.constant 0 : index
      %48 = vector.load %arg8[%c0_27, %c0_28] : memref<1x32xf32, #tpu.memory_space<vmem>>, vector<1x32xf32>
      %49 = vector.broadcast %48 : vector<1x32xf32> to vector<16x32xf32>
      %50 = arith.addf %23, %49 : vector<16x32xf32>
      %c0_29 = arith.constant 0 : index
      %c0_30 = arith.constant 0 : index
      %51 = vector.load %arg9[%c0_29, %c0_30] : memref<16x32xf32, #tpu.memory_space<vmem>>, vector<16x32xf32>
      tpu.vector_store %arg9[%c0_29, %c0_30], %50 {strides = array<i32>} : memref<16x32xf32, #tpu.memory_space<vmem>>, vector<16x32xf32>,
    } else {
    }
    %3 = arith.index_cast %arg1 : i32 to index
    %c0 = arith.constant 0 : index
    %c0_1 = arith.constant 0 : index
    %4 = vector.load %arg5[%3, %c0, %c0_1] : memref<1x32x128xbf16, #tpu.memory_space<vmem>>, vector<1x32x128xbf16>
    %5 = vector.shape_cast %4 : vector<1x32x128xbf16> to vector<32x128xbf16>
    %6 = arith.index_cast %arg1 : i32 to index
    %c0_2 = arith.constant 0 : index
    %c0_3 = arith.constant 0 : index
    %7 = vector.load %arg6[%6, %c0_2, %c0_3] : memref<1x1x128xf32, #tpu.memory_space<vmem>>, vector<1x1x128xf32>
    %8 = vector.shape_cast %7 : vector<1x1x128xf32> to vector<1x128xf32>
    %9 = arith.index_cast %arg1 : i32 to index
    %c0_4 = arith.constant 0 : index
    %c0_5 = arith.constant 0 : index
    %10 = vector.load %arg7[%9, %c0_4, %c0_5] : memref<1x128x32xbf16, #tpu.memory_space<vmem>>, vector<1x128x32xbf16>
    %11 = vector.shape_cast %10 : vector<1x128x32xbf16> to vector<128x32xbf16>
    %c0_6 = arith.constant 0 : index
    %c0_7 = arith.constant 0 : index
    %12 = vector.load %arg10[%c0_6, %c0_7] : memref<16x32xbf16, #tpu.memory_space<vmem>>, vector<16x32xbf16>
    %cst = arith.constant dense<0.000000e+00> : vector<16x128xf32>
    %13 = tpu.matmul %12, %5, %cst {dimension_numbers = #tpu.dot_dimension_numbers<[1], [0], [0], [1], [0, 0, 1, 1], [], []>} : vector<16x32xbf16>, vector<32x128xbf16>, vector<16x128xf32> -> vector<16x128xf32>
    %14 = vector.broadcast %8 : vector<1x128xf32> to vector<16x128xf32>
    %15 = arith.addf %13, %14 : vector<16x128xf32>
    %cst_8 = arith.constant 0.000000e+00 : f32
    %16 = vector.broadcast %cst_8 : f32 to vector<16x128xf32>
    %17 = arith.maximumf %15, %16 : vector<16x128xf32>
    %18 = arith.truncf %17 : vector<16x128xf32> to vector<16x128xbf16>
    %c0_9 = arith.constant 0 : index
    %c0_10 = arith.constant 0 : index
    %19 = vector.load %arg9[%c0_9, %c0_10] : memref<16x32xf32, #tpu.memory_space<vmem>>, vector<16x32xf32>
    %cst_11 = arith.constant dense<0.000000e+00> : vector<16x32xf32>
    %20 = tpu.matmul %18, %11, %cst_11 {dimension_numbers = #tpu.dot_dimension_numbers<[1], [0], [0], [1], [0, 0, 1, 1], [], []>} : vector<16x128xbf16>, vector<128x32xbf16>, vector<16x32xf32> -> vector<16x32xf32>
    %21 = arith.addf %19, %20 : vector<16x32xf32>
    %c0_12 = arith.constant 0 : index
    %c0_13 = arith.constant 0 : index
    %22 = vector.load %arg9[%c0_12, %c0_13] : memref<16x32xf32, #tpu.memory_space<vmem>>, vector<16x32xf32>
    tpu.vector_store %arg9[%c0_12, %c0_13], %21 {strides = array<i32>} : memref<16x32xf32, #tpu.memory_space<vmem>>, vector<16x32xf32>,
    return
  }
  func.func @transform_0(%arg0: i32, %arg1: i32) -> (i32, i32) {
    %c0_i32 = arith.constant 0 : i32
    %c0_i32_0 = arith.constant 0 : i32
    return %arg0, %c0_i32 : i32, i32
  }
  func.func @transform_1(%arg0: i32, %arg1: i32) -> (i32, i32) {
    %c0_i32 = arith.constant 0 : i32
    %c0_i32_0 = arith.constant 0 : i32
    %c0_i32_1 = arith.constant 0 : i32
    return %c0_i32, %c0_i32_0 : i32, i32
  }
  func.func @transform_2(%arg0: i32, %arg1: i32) -> (i32, i32) {
    %c0_i32 = arith.constant 0 : i32
    %c0_i32_0 = arith.constant 0 : i32
    %c0_i32_1 = arith.constant 0 : i32
    return %c0_i32, %c0_i32_0 : i32, i32
  }
  func.func @transform_3(%arg0: i32, %arg1: i32) -> (i32, i32, i32) {
    %c0_i32 = arith.constant 0 : i32
    %c0_i32_0 = arith.constant 0 : i32
    %c0_i32_1 = arith.constant 0 : i32
    %c0_i32_2 = arith.constant 0 : i32
    return %c0_i32, %c0_i32_0, %c0_i32_1 : i32, i32, i32
  }
  func.func @transform_4(%arg0: i32, %arg1: i32) -> (i32, i32, i32) {
    %c0_i32 = arith.constant 0 : i32
    %c0_i32_0 = arith.constant 0 : i32
    %c0_i32_1 = arith.constant 0 : i32
    %c0_i32_2 = arith.constant 0 : i32
    return %c0_i32, %c0_i32_0, %c0_i32_1 : i32, i32, i32
  }
  func.func @transform_5(%arg0: i32, %arg1: i32) -> (i32, i32, i32) {
    %c0_i32 = arith.constant 0 : i32
    %c0_i32_0 = arith.constant 0 : i32
    %c0_i32_1 = arith.constant 0 : i32
    %c0_i32_2 = arith.constant 0 : i32
    return %c0_i32, %c0_i32_0, %c0_i32_1 : i32, i32, i32
  }
  func.func @transform_6(%arg0: i32, %arg1: i32) -> (i32, i32) {
    %c0_i32 = arith.constant 0 : i32
    %c0_i32_0 = arith.constant 0 : i32
    %c0_i32_1 = arith.constant 0 : i32
    return %c0_i32, %c0_i32_0 : i32, i32
  }
  func.func @transform_7(%arg0: i32, %arg1: i32) -> (i32, i32) {
    %c0_i32 = arith.constant 0 : i32
    %c0_i32_0 = arith.constant 0 : i32
    return %arg0, %c0_i32 : i32, i32
  }
}

</mosaic_0001>

<llo_original>
// kernel: fc_net_layer.1
$region0: #{fc_net_layer.1}
  #allocation0 [shape = 'u32[]', space=smem, size = 0x4, offset = 0x4, fixed_abs, tag = 'smem constant byte address 0x4 - core index']
  #allocation1 [shape = 'u32[144,128]{1,0:T(1,128)}', space=vmem, size = 0x12000, scoped, tag = 'internal scratch']
  #allocation2 [shape = 'bf16[16,32]{1,0:T(16,128)(2,1)}', space=vmem, size = 0x1000, scoped, tag = 'scratch operand']
  %s0 = inlined_call_operand.hbm [shape: f32[16,32], index: 0, kind: input, shape index: {}]
  %s1 = inlined_call_operand.hbm [shape: f32[1,32], index: 1, kind: input, shape index: {}]
  %s2 = inlined_call_operand.hbm [shape: f32[1,32], index: 2, kind: input, shape index: {}]
  %s3 = inlined_call_operand.hbm [shape: bf16[1,32,128], index: 3, kind: input, shape index: {}]
  %s4 = inlined_call_operand.hbm [shape: f32[1,1,128], index: 4, kind: input, shape index: {}]
  %s5 = inlined_call_operand.hbm [shape: bf16[1,128,32], index: 5, kind: input, shape index: {}]
  %s6 = inlined_call_operand.hbm [shape: f32[1,32], index: 6, kind: input, shape index: {}]
  %s7 = inlined_call_operand.hbm [shape: f32[16,32], index: 7, kind: output, shape index: {}]
  %s8 = sld [smem:[#allocation0]]
  $region70: #{fc_net_layer.1} parent=0
    _
  %s10 = ssub.s32 1, %s8
  %s11 = scalar_select 0, %s10, %s8
  $region1: #{fc_net_layer.1} parent=0
    #allocation3 [shape = 'u8[8192]{0}', space=vmem, size = 0x2000, scoped, tag = 'input window, operand 0, single buffered']
    #allocation4 [shape = 's32[1]{0}', space=sflag, size = 0x4, scoped, tag = 'scoped memory for fc_net_layer.1']
    #allocation5 [shape = 's32[1]{0}', space=sflag, size = 0x4, scoped, tag = 'scoped memory for fc_net_layer.1']
    #allocation6 [shape = 'u8[512]{0}', space=vmem, size = 0x400, scoped, tag = 'input window, operand 1, single buffered']
    #allocation7 [shape = 's32[1]{0}', space=sflag, size = 0x4, scoped, tag = 'scoped memory for fc_net_layer.1']
    #allocation8 [shape = 'u8[512]{0}', space=vmem, size = 0x400, scoped, tag = 'input window, operand 2, single buffered']
    #allocation9 [shape = 'u8[8192]{0}', space=vmem, size = 0x2000, scoped, tag = 'input window, operand 3, single buffered']
    #allocation10 [shape = 's32[1]{0}', space=sflag, size = 0x4, scoped, tag = 'scoped memory for fc_net_layer.1']
    #allocation11 [shape = 'u8[512]{0}', space=vmem, size = 0x400, scoped, tag = 'input window, operand 4, single buffered']
    #allocation12 [shape = 'u8[32768]{0}', space=vmem, size = 0x8000, scoped, tag = 'input window, operand 5, single buffered']
    #allocation13 [shape = 's32[1]{0}', space=sflag, size = 0x4, scoped, tag = 'scoped memory for fc_net_layer.1']
    #allocation14 [shape = 'u8[512]{0}', space=vmem, size = 0x400, scoped, tag = 'input window, operand 6, single buffered']
    #allocation15 [shape = 'u8[8192]{0}', space=vmem, size = 0x2000, scoped, tag = 'output window, operand 0, single buffered']
    %12 = vsyncpa [#allocation4], 0
    %13 = vsyncpa [#allocation7], 0
    %14 = vsyncpa [#allocation10], 0
    %15 = vsyncpa [#allocation13], 0
    %16 = vsyncpa [#allocation5], 0
    // Predicated region
    $region2: #{fc_net_layer.1} parent=1 // pred_check
      _
    $region3: #{fc_net_layer.1} parent=1 // pred_check_branch
      %18 = sbr.rel (0) target = $region5
    $region4: #{fc_net_layer.1} parent=1 // pred_region
      %s20 = ssub.s32 256, 256
      %21 = vsyncadd [#allocation4], %s20
      %s22 = sshll.u32 [#allocation3], 4
      %s23 = int_to_ptr.vmem [resolvable:$true] %s22
      %28 = dma.hbm_to_vmem [thread:$0]  %s0, 256, %s23, [#allocation4], 128, 128, 8
    $region5: #{fc_net_layer.1} parent=1 // pred_fallthru
      _
    // Predicated region
    $region6: #{fc_net_layer.1} parent=1 // pred_check
      _
    $region7: #{fc_net_layer.1} parent=1 // pred_check_branch
      %30 = sbr.rel (0) target = $region9
    $region8: #{fc_net_layer.1} parent=1 // pred_region
      %s32 = ssub.s32 16, 16
      %33 = vsyncadd [#allocation7], %s32
      %s35 = sshll.u32 [#allocation6], 4
      %s36 = int_to_ptr.vmem [resolvable:$true] %s35
      %38 = dma.hbm_to_vmem [thread:$0]  %s1, 16, %s36, [#allocation7]
    $region9: #{fc_net_layer.1} parent=1 // pred_fallthru
      _
    // Predicated region
    $region10: #{fc_net_layer.1} parent=1 // pred_check
      _
    $region11: #{fc_net_layer.1} parent=1 // pred_check_branch
      %40 = sbr.rel (0) target = $region13
    $region12: #{fc_net_layer.1} parent=1 // pred_region
      %s42 = ssub.s32 16, 16
      %43 = vsyncadd [#allocation7], %s42
      %s45 = sshll.u32 [#allocation8], 4
      %s46 = int_to_ptr.vmem [resolvable:$true] %s45
      %48 = dma.hbm_to_vmem [thread:$0]  %s2, 16, %s46, [#allocation7]
    $region13: #{fc_net_layer.1} parent=1 // pred_fallthru
      _
    // Predicated region
    $region14: #{fc_net_layer.1} parent=1 // pred_check
      _
    $region15: #{fc_net_layer.1} parent=1 // pred_check_branch
      %50 = sbr.rel (0) target = $region17
    $region16: #{fc_net_layer.1} parent=1 // pred_region
      %s52 = ssub.s32 256, 256
      %53 = vsyncadd [#allocation10], %s52
      %s54 = sshll.u32 [#allocation9], 4
      %s55 = int_to_ptr.vmem [resolvable:$true] %s54
      %60 = dma.hbm_to_vmem [thread:$0]  %s3, 256, %s55, [#allocation10], 64, 64, 4
    $region17: #{fc_net_layer.1} parent=1 // pred_fallthru
      _
    // Predicated region
    $region18: #{fc_net_layer.1} parent=1 // pred_check
      _
    $region19: #{fc_net_layer.1} parent=1 // pred_check_branch
      %62 = sbr.rel (0) target = $region21
    $region20: #{fc_net_layer.1} parent=1 // pred_region
      %s64 = ssub.s32 16, 16
      %65 = vsyncadd [#allocation10], %s64
      %s67 = sshll.u32 [#allocation11], 4
      %s68 = int_to_ptr.vmem [resolvable:$true] %s67
      %70 = dma.hbm_to_vmem [thread:$0]  %s4, 16, %s68, [#allocation10]
    $region21: #{fc_net_layer.1} parent=1 // pred_fallthru
      _
    // Predicated region
    $region22: #{fc_net_layer.1} parent=1 // pred_check
      _
    $region23: #{fc_net_layer.1} parent=1 // pred_check_branch
      %72 = sbr.rel (0) target = $region25
    $region24: #{fc_net_layer.1} parent=1 // pred_region
      %s74 = ssub.s32 1024, 1024
      %75 = vsyncadd [#allocation13], %s74
      %s76 = sshll.u32 [#allocation12], 4
      %s77 = int_to_ptr.vmem [resolvable:$true] %s76
      %82 = dma.hbm_to_vmem [thread:$0]  %s5, 1024, %s77, [#allocation13], 64, 64, 4
    $region25: #{fc_net_layer.1} parent=1 // pred_fallthru
      _
    // Predicated region
    $region26: #{fc_net_layer.1} parent=1 // pred_check
      _
    $region27: #{fc_net_layer.1} parent=1 // pred_check_branch
      %84 = sbr.rel (0) target = $region29
    $region28: #{fc_net_layer.1} parent=1 // pred_region
      %s86 = ssub.s32 16, 16
      %87 = vsyncadd [#allocation13], %s86
      %s89 = sshll.u32 [#allocation14], 4
      %s90 = int_to_ptr.vmem [resolvable:$true] %s89
      %92 = dma.hbm_to_vmem [thread:$0]  %s6, 16, %s90, [#allocation13]
    $region29: #{fc_net_layer.1} parent=1 // pred_fallthru
      _
    // Predicated region
    $region30: #{fc_net_layer.1} parent=1 // pred_check
      _
    $region31: #{fc_net_layer.1} parent=1 // pred_check_branch
      %94 = sbr.rel (0) target = $region33
    $region32: #{fc_net_layer.1} parent=1 // pred_region
      %95 = dma.done [#allocation4], 256
    $region33: #{fc_net_layer.1} parent=1 // pred_fallthru
      _
    // Predicated region
    $region34: #{fc_net_layer.1} parent=1 // pred_check
      _
    $region35: #{fc_net_layer.1} parent=1 // pred_check_branch
      %97 = sbr.rel (0) target = $region37
    $region36: #{fc_net_layer.1} parent=1 // pred_region
      %98 = dma.done [#allocation7], 16
    $region37: #{fc_net_layer.1} parent=1 // pred_fallthru
      _
    // Predicated region
    $region38: #{fc_net_layer.1} parent=1 // pred_check
      _
    $region39: #{fc_net_layer.1} parent=1 // pred_check_branch
      %100 = sbr.rel (0) target = $region41
    $region40: #{fc_net_layer.1} parent=1 // pred_region
      %101 = dma.done [#allocation7], 16
    $region41: #{fc_net_layer.1} parent=1 // pred_fallthru
      _
    // Predicated region
    $region42: #{fc_net_layer.1} parent=1 // pred_check
      _
    $region43: #{fc_net_layer.1} parent=1 // pred_check_branch
      %103 = sbr.rel (0) target = $region45
    $region44: #{fc_net_layer.1} parent=1 // pred_region
      %104 = dma.done [#allocation10], 256
    $region45: #{fc_net_layer.1} parent=1 // pred_fallthru
      _
    // Predicated region
    $region46: #{fc_net_layer.1} parent=1 // pred_check
      _
    $region47: #{fc_net_layer.1} parent=1 // pred_check_branch
      %106 = sbr.rel (0) target = $region49
    $region48: #{fc_net_layer.1} parent=1 // pred_region
      %107 = dma.done [#allocation10], 16
    $region49: #{fc_net_layer.1} parent=1 // pred_fallthru
      _
    // Predicated region
    $region50: #{fc_net_layer.1} parent=1 // pred_check
      _
    $region51: #{fc_net_layer.1} parent=1 // pred_check_branch
      %109 = sbr.rel (0) target = $region53
    $region52: #{fc_net_layer.1} parent=1 // pred_region
      %110 = dma.done [#allocation13], 1024
    $region53: #{fc_net_layer.1} parent=1 // pred_fallthru
      _
    // Predicated region
    $region54: #{fc_net_layer.1} parent=1 // pred_check
      _
    $region55: #{fc_net_layer.1} parent=1 // pred_check_branch
      %112 = sbr.rel (0) target = $region57
    $region56: #{fc_net_layer.1} parent=1 // pred_region
      %113 = dma.done [#allocation13], 16
    $region57: #{fc_net_layer.1} parent=1 // pred_fallthru
      _
    %p115 = scmp.eq.s32.totalorder 0, 0
    // Predicated region
    $region58: #{fc_net_layer.1} parent=1 // pred_check
      %p116 = pneg %p115
    $region59: #{fc_net_layer.1} parent=1 // pred_check_branch
      %118 = sbr.rel (%p116) target = $region61
    $region60: #{fc_net_layer.1} parent=1 // pred_region
      %v119 = vld [vmem:[#allocation3] sm:$0xff]
      %v120 = vld [vmem:[#allocation3 + $0x8] sm:$0xff]
      %vm121 = vcmask 261120
      %v122 = vsel %vm121, %v119, 0.0
      %123 = vadd.xlane.f32.xlu0 %v122
      %v124 = vpop.xlane.xlu0 %123
      %v125 = vsel %vm121, %v120, 0.0
      %126 = vadd.xlane.f32.xlu0 %v125
      %v127 = vpop.xlane.xlu0 %126
      %v128 = vrcp.pop 32.0
      %v129 = vmul.f32 %v124, %v128
      %v130 = vmul.f32 %v127, %v128
      %v131 = vsub.f32 %v119, %v129
      %v132 = vsub.f32 %v120, %v130
      %v133 = vmul.f32 %v131, %v131
      %v134 = vmul.f32 %v132, %v132
      %v135 = vsel %vm121, %v133, 0.0
      %136 = vadd.xlane.f32.xlu0 %v135
      %v137 = vpop.xlane.xlu0 %136
      %v138 = vsel %vm121, %v134, 0.0
      %139 = vadd.xlane.f32.xlu0 %v138
      %v140 = vpop.xlane.xlu0 %139
      %v141 = vmul.f32 %v137, %v128
      %v142 = vmul.f32 %v140, %v128
      %v143 = vadd.f32 %v141, 1e-05
      %v144 = vadd.f32 %v142, 1e-05
      %v145 = vrsqrt.pop %v143
      %v146 = vrsqrt.pop %v144
      %v147 = vmul.f32 %v131, %v145
      %v148 = vmul.f32 %v132, %v146
      %v149 = vld [vmem:[#allocation6] sm:$0x1]
      %v151 = vlaneseq
      %v152 = vshrl.u32 %v151, 7
      %v153 = vsub.s32 0, %v152
      %v154 = vrot.slane %v149, %v153
      %v156 = vmul.f32 %v147, %v154
      %v157 = vmul.f32 %v148, %v154
      %v158 = vld [vmem:[#allocation8] sm:$0x1]
      %v160 = vlaneseq
      %v161 = vshrl.u32 %v160, 7
      %v162 = vsub.s32 0, %v161
      %v163 = vrot.slane %v158, %v162
      %v165 = vadd.f32 %v156, %v163
      %v166 = vadd.f32 %v157, %v163
      %v167 = vpack.c.bf16 %v166, %v165
      %168 = vst.msk [vmem:[#allocation2] sm:$0xff] %vm121, %v167
      %v169 = vld [vmem:[#allocation14] sm:$0x1]
      %v171 = vlaneseq
      %v172 = vshrl.u32 %v171, 7
      %v173 = vsub.s32 0, %v172
      %v174 = vrot.slane %v169, %v173
      %v176 = vadd.f32 %v119, %v174
      %v177 = vadd.f32 %v120, %v174
      %178 = vst.msk [vmem:[#allocation15] sm:$0xff] %vm121, %v176
      %179 = vst.msk [vmem:[#allocation15 + $0x8] sm:$0xff] %vm121, %v177
    $region61: #{fc_net_layer.1} parent=1 // pred_fallthru
      _
    %s180 = smul.u32 0, 4
    %s181 = smul.addr %s180, 4
    %s182 = scalar_lea.vmem [#allocation9], %s181
    %v183 = vld [vmem:[%s182] sm:$0xf]
    %v184 = vld [vmem:[%s182 + $0x4] sm:$0xf]
    %v185 = vld [vmem:[%s182 + $0x8] sm:$0xf]
    %v186 = vld [vmem:[%s182 + $0xc] sm:$0xf]
    %v187 = vld [vmem:[#allocation11] sm:$0x1]
    %s188 = smul.u32 0, 16
    %s189 = smul.addr %s188, 4
    %s190 = scalar_lea.vmem [#allocation12], %s189
    %v191 = vld [vmem:[%s190] sm:$0xf]
    %v192 = vld [vmem:[%s190 + $0x4] sm:$0xf]
    %v193 = vld [vmem:[%s190 + $0x8] sm:$0xf]
    %v194 = vld [vmem:[%s190 + $0xc] sm:$0xf]
    %v195 = vld [vmem:[%s190 + $0x10] sm:$0xf]
    %v196 = vld [vmem:[%s190 + $0x14] sm:$0xf]
    %v197 = vld [vmem:[%s190 + $0x18] sm:$0xf]
    %v198 = vld [vmem:[%s190 + $0x1c] sm:$0xf]
    %v199 = vld [vmem:[%s190 + $0x20] sm:$0xf]
    %v200 = vld [vmem:[%s190 + $0x24] sm:$0xf]
    %v201 = vld [vmem:[%s190 + $0x28] sm:$0xf]
    %v202 = vld [vmem:[%s190 + $0x2c] sm:$0xf]
    %v203 = vld [vmem:[%s190 + $0x30] sm:$0xf]
    %v204 = vld [vmem:[%s190 + $0x34] sm:$0xf]
    %v205 = vld [vmem:[%s190 + $0x38] sm:$0xf]
    %v206 = vld [vmem:[%s190 + $0x3c] sm:$0xf]
    %v207 = vld [vmem:[#allocation2] sm:$0xff]
    %v209 = vlaneseq
    %v210 = vshrl.u32 %v209, 7
    %v211 = vsub.s32 0, %v210
    %v212 = vrot.slane %v187, %v211
    %v218 = vunpack.c.l.b16 %v183
    %v219 = vunpack.c.l.b16 %v184
    %v220 = vunpack.c.l.b16 %v185
    %v221 = vunpack.c.l.b16 %v186
    %v222 = vpack.c.b16 %v219, %v218
    %v223 = vpack.c.b16 %v221, %v220
    %vm226 = vcmask 261120
    %v228 = vsel %vm226, %v207, 0
    %230 = vmatprep.subr.bf16.mxu0 0
    %231 = vmatpush1.bf16.msra.mxu0 %v222
    %232 = vmatprep.subr.bf16.mxu0 0
    %233 = vmatpush1.bf16.msra.mxu0 %v223
    %234 = vmatprep.subr.bf16.mxu0 0
    %235 = vmatpush1.bf16.msra.mxu0 0
    %236 = vmatprep.subr.bf16.mxu0 0
    %237 = vmatpush1.bf16.msra.mxu0 0
    %238 = vmatprep.subr.bf16.mxu0 0
    %239 = vmatpush1.bf16.msra.mxu0 0
    %240 = vmatprep.subr.bf16.mxu0 0
    %241 = vmatpush1.bf16.msra.mxu0 0
    %242 = vmatprep.subr.bf16.mxu0 0
    %243 = vmatpush1.bf16.msra.mxu0 0
    %244 = vmatprep.subr.bf16.mxu0 0
    %245 = vmatpush1.bf16.msra.mxu0 0
    %246 = vmatprep.subr.bf16.mxu0 0
    %247 = vmatpush1.bf16.msra.mxu0 0
    %248 = vmatprep.subr.bf16.mxu0 0
    %249 = vmatpush1.bf16.msra.mxu0 0
    %250 = vmatprep.subr.bf16.mxu0 0
    %251 = vmatpush1.bf16.msra.mxu0 0
    %252 = vmatprep.subr.bf16.mxu0 0
    %253 = vmatpush1.bf16.msra.mxu0 0
    %254 = vmatprep.subr.bf16.mxu0 0
    %255 = vmatpush1.bf16.msra.mxu0 0
    %256 = vmatprep.subr.bf16.mxu0 0
    %257 = vmatpush1.bf16.msra.mxu0 0
    %258 = vmatprep.subr.bf16.mxu0 0
    %259 = vmatpush1.bf16.msra.mxu0 0
    %260 = vmatprep.subr.bf16.mxu0 0
    %261 = vmatpush1.bf16.msra.mxu0 0
    %262 = vmatprep.mubr.bf16.mxu0 0
    %263 = vmatmul.mubr.bf16.gmra.mrb[0].mxu0 %v228
    %v264 = vpop.f32.mrb[0].mxu0
    %v265 = vadd.f32 %v212, %v264
    %v266 = vpop.f32.mrb[0].mxu0
    %v267 = vpop.f32.mrb[0].mxu0
    %v268 = vadd.f32 %v212, %v267
    %v269 = vpop.f32.mrb[0].mxu0
    %270 = vdwg.mxu0
    %v271 = vmax.f32 %v265, 0.0
    %v272 = vmax.f32 %v268, 0.0
    %v273 = vpack.c.bf16 %v272, %v271
    %v274 = vld [vmem:[#allocation15] sm:$0xff]
    %v275 = vld [vmem:[#allocation15 + $0x8] sm:$0xff]
    %v292 = vunpack.c.l.b16 %v191
    %v293 = vunpack.c.l.b16 %v192
    %v294 = vunpack.c.l.b16 %v193
    %v295 = vunpack.c.l.b16 %v194
    %v296 = vunpack.c.l.b16 %v195
    %v297 = vunpack.c.l.b16 %v196
    %v298 = vunpack.c.l.b16 %v197
    %v299 = vunpack.c.l.b16 %v198
    %v300 = vunpack.c.l.b16 %v199
    %v301 = vunpack.c.l.b16 %v200
    %v302 = vunpack.c.l.b16 %v201
    %v303 = vunpack.c.l.b16 %v202
    %v304 = vunpack.c.l.b16 %v203
    %v305 = vunpack.c.l.b16 %v204
    %v306 = vunpack.c.l.b16 %v205
    %v307 = vunpack.c.l.b16 %v206
    %v308 = vpack.c.b16 %v293, %v292
    %v309 = vpack.c.b16 %v295, %v294
    %v310 = vpack.c.b16 %v297, %v296
    %v311 = vpack.c.b16 %v299, %v298
    %v312 = vpack.c.b16 %v301, %v300
    %v313 = vpack.c.b16 %v303, %v302
    %v314 = vpack.c.b16 %v305, %v304
    %v315 = vpack.c.b16 %v307, %v306
    %324 = vmatprep.subr.bf16.mxu0 0
    %325 = vmatpush1.bf16.msra.mxu0 %v308
    %326 = vmatprep.subr.bf16.mxu0 0
    %327 = vmatpush1.bf16.msra.mxu0 %v309
    %328 = vmatprep.subr.bf16.mxu0 0
    %329 = vmatpush1.bf16.msra.mxu0 %v310
    %330 = vmatprep.subr.bf16.mxu0 0
    %331 = vmatpush1.bf16.msra.mxu0 %v311
    %332 = vmatprep.subr.bf16.mxu0 0
    %333 = vmatpush1.bf16.msra.mxu0 %v312
    %334 = vmatprep.subr.bf16.mxu0 0
    %335 = vmatpush1.bf16.msra.mxu0 %v313
    %336 = vmatprep.subr.bf16.mxu0 0
    %337 = vmatpush1.bf16.msra.mxu0 %v314
    %338 = vmatprep.subr.bf16.mxu0 0
    %339 = vmatpush1.bf16.msra.mxu0 %v315
    %340 = vmatprep.subr.bf16.mxu0 0
    %341 = vmatpush1.bf16.msra.mxu0 0
    %342 = vmatprep.subr.bf16.mxu0 0
    %343 = vmatpush1.bf16.msra.mxu0 0
    %344 = vmatprep.subr.bf16.mxu0 0
    %345 = vmatpush1.bf16.msra.mxu0 0
    %346 = vmatprep.subr.bf16.mxu0 0
    %347 = vmatpush1.bf16.msra.mxu0 0
    %348 = vmatprep.subr.bf16.mxu0 0
    %349 = vmatpush1.bf16.msra.mxu0 0
    %350 = vmatprep.subr.bf16.mxu0 0
    %351 = vmatpush1.bf16.msra.mxu0 0
    %352 = vmatprep.subr.bf16.mxu0 0
    %353 = vmatpush1.bf16.msra.mxu0 0
    %354 = vmatprep.subr.bf16.mxu0 0
    %355 = vmatpush1.bf16.msra.mxu0 0
    %356 = vmatprep.mubr.bf16.mxu0 0
    %357 = vmatmul.mubr.bf16.gmra.mrb[0].mxu0 %v273
    %v358 = vpop.f32.mrb[0].mxu0
    %v359 = vadd.f32 0.0, %v358
    %v360 = vpop.f32.mrb[0].mxu0
    %v361 = vpop.f32.mrb[0].mxu0
    %v362 = vadd.f32 0.0, %v361
    %v363 = vpop.f32.mrb[0].mxu0
    %364 = vdwg.mxu0
    %v365 = vadd.f32 %v274, %v359
    %v366 = vadd.f32 %v275, %v362
    %367 = vst.msk [vmem:[#allocation15] sm:$0xff] %vm226, %v365
    %368 = vst.msk [vmem:[#allocation15 + $0x8] sm:$0xff] %vm226, %v366
    // Predicated region
    $region62: #{fc_net_layer.1} parent=1 // pred_check
      _
    $region63: #{fc_net_layer.1} parent=1 // pred_check_branch
      %370 = sbr.rel (0) target = $region65
    $region64: #{fc_net_layer.1} parent=1 // pred_region
      %s372 = ssub.s32 256, 256
      %373 = vsyncadd [#allocation5], %s372
      %s374 = sshll.u32 [#allocation15], 4
      %s375 = int_to_ptr.vmem [resolvable:$true] %s374
      %380 = dma.vmem_to_hbm [thread:$0]  %s375, 256, %s7, [#allocation5], 128, 128, 8
    $region65: #{fc_net_layer.1} parent=1 // pred_fallthru
      _
    // Predicated region
    $region66: #{fc_net_layer.1} parent=1 // pred_check
      _
    $region67: #{fc_net_layer.1} parent=1 // pred_check_branch
      %382 = sbr.rel (0) target = $region69
    $region68: #{fc_net_layer.1} parent=1 // pred_region
      %383 = dma.done [#allocation5], 256
    $region69: #{fc_net_layer.1} parent=1 // pred_fallthru
      _
    %384 = vsyncpa [#allocation4], 1
    %385 = vsyncpa [#allocation7], 1
    %386 = vsyncpa [#allocation10], 1
    %387 = vsyncpa [#allocation13], 1
    %388 = vsyncpa [#allocation5], 1

</llo_original>
